<compile_context>
chip_gen: v7x
topology: tpu7x:2x2x1
jax: 0.10.0
libtpu: 0.0.40
codegen_flags: <defaults>
</compile_context>

<pallas_src>
import jax
import jax.numpy as jnp
from jax.experimental import pallas as pl
from jax.experimental.pallas import tpu as pltpu

IN_FEATURES = 117
OUT_FEATURES = 1
DEFAULT_BLOCK_ROWS = 8192   # 8192 rows * 128 lanes * 4B = 4 MiB per x buffer
                            # (x2 double-buffering = 8 MiB) -> OK on v5e/v6e/v7x
                            # at default scoped-VMEM limits.


def _cdiv(a, b):
    return -(-a // b)


def _round_up(n, m):
    return _cdiv(n, m) * m


def _choose_batch_tile(B, block_rows):
    """Balanced, sublane-aligned batch tile.

    * Tiles are balanced (no near-empty tail tile).
    * >= 2 tiles when B is large enough, so the "parallel" grid axis can shard
      across the two TensorCores on v7x.
    * Rows are a multiple of 8 (f32 sublane tile).  (bf16 inputs would want 16.)
    """
    n_tiles = max(_cdiv(B, block_rows), 2 if B > 8 else 1)
    tb = _round_up(_cdiv(B, n_tiles), 8)
    return max(8, min(tb, block_rows))


def linear_kernel(x_ref, w_ref, b_ref, o_ref):
    # x_ref: (TB, 117) VMEM tile (pipelined / double-buffered over the batch grid)
    # w_ref: (1, 117)  VMEM, resident across all grid steps (constant index_map)
    # b_ref: (1,)      SMEM scalar
    # o_ref: (1, 1, TB) VMEM, lane-dense output block
    xw = x_ref[...].astype(jnp.float32) * w_ref[...].astype(jnp.float32)  # VPU
    y = jnp.sum(xw, axis=-1)          # masked lane reduce over logical 117 -> (TB,)
    y = y + b_ref[0].astype(jnp.float32)
    o_ref[...] = y[None, None, :].astype(o_ref.dtype)


def linear_forward(x, weight, bias, *, block_rows=DEFAULT_BLOCK_ROWS):
    """x: [B, 117], weight: [1, 117], bias: [1] -> [B, 1]."""
    B, F = x.shape
    assert F == IN_FEATURES
    assert weight.shape == (OUT_FEATURES, IN_FEATURES)
    assert bias.shape == (OUT_FEATURES,)

    TB = _choose_batch_tile(B, block_rows)
    G = _cdiv(B, TB)          # no batch padding: last tile may be partial

    out_tiles = pl.pallas_call(
        linear_kernel,
        out_shape=jax.ShapeDtypeStruct((G, 1, TB), x.dtype),
        grid_spec=pltpu.PrefetchScalarGridSpec(
            num_scalar_prefetch=0,
            grid=(G,),
            in_specs=[
                # x: one (TB, 117) tile per grid step; last dim is the full
                # array dim, so no wrapper padding is needed.  Double-buffered.
                pl.BlockSpec((TB, IN_FEATURES), lambda i: (i, 0)),
                # weight: constant index_map -> stays resident in VMEM.
                pl.BlockSpec((OUT_FEATURES, IN_FEATURES), lambda i: (0, 0)),
                # bias: scalar in SMEM.
                pl.BlockSpec(memory_space=pltpu.MemorySpace.SMEM),
            ],
            # Lane-dense (1, 1, TB) output blocks -> unmasked vector stores;
            # last two block dims are (1, TB) == full array dims for any G.
            out_specs=pl.BlockSpec((1, 1, TB), lambda i: (i, 0, 0)),
        ),
        compiler_params=pltpu.CompilerParams(
            dimension_semantics=("parallel",),   # batch tiles are independent
        ),
    )(x, weight, bias)

    # Layout plumbing back to the PyTorch-style (B, 1) output; rows of the
    # partial last tile beyond B are garbage and sliced off here.
    return out_tiles.reshape(G * TB)[:B].reshape(B, OUT_FEATURES)


if __name__ == "__main__":
    key = jax.random.PRNGKey(0)
    kx, kw, kb = jax.random.split(key, 3)

    # Deterministic parameter init mimicking nn.Linear default
    # (uniform in +/- 1/sqrt(in_features)).
    bound = 1.0 / (IN_FEATURES ** 0.5)
    weight = jax.random.uniform(
        kw, (OUT_FEATURES, IN_FEATURES), jnp.float32, -bound, bound)
    bias = jax.random.uniform(kb, (OUT_FEATURES,), jnp.float32, -bound, bound)

    # Small batch of "mushroom" feature vectors.
    B = 8
    x = jax.random.normal(kx, (B, IN_FEATURES), jnp.float32)

    out = linear_forward(x, weight, bias)
    out = jax.block_until_ready(out)

    # Cross-check against plain JAX reference.
    ref = x @ weight.T + bias
    assert out.shape == (B, OUT_FEATURES)
    assert jnp.allclose(out, ref, atol=1e-4, rtol=1e-4)

    print("KERNEL_OK")
</pallas_src>

<mosaic_0001>
module attributes {stable_mosaic.version = 11 : i64} {
  func.func @linear_kernel(%arg0: i32, %arg1: memref<8x117xf32, #tpu.memory_space<vmem>>, %arg2: memref<1x117xf32, #tpu.memory_space<vmem>>, %arg3: memref<1xf32, #tpu.memory_space<smem>>, %arg4: memref<1x1x8xf32, #tpu.memory_space<vmem>>) attributes {dimension_semantics = [#tpu.dimension_semantics<parallel>], iteration_bounds = array<i64: 1>, scalar_prefetch = 0 : i64, scratch_operands = 0 : i64, tpu.core_type = #tpu.core_type<tc>, window_params = [{transform_indices = @transform_0, window_bounds = array<i64: 8, 117>}, {pipeline_mode = #tpu.pipeline_mode<synchronous>, transform_indices = @transform_1, window_bounds = array<i64: 1, 117>}, {transform_indices = @transform_2, window_bounds = array<i64: 1>}, {transform_indices = @transform_3, window_bounds = array<i64: 1, 1, 8>}]} {
    %c0 = arith.constant 0 : index
    %c0_0 = arith.constant 0 : index
    %0 = vector.load %arg1[%c0, %c0_0] : memref<8x117xf32, #tpu.memory_space<vmem>>, vector<8x117xf32>
    %c0_1 = arith.constant 0 : index
    %c0_2 = arith.constant 0 : index
    %1 = vector.load %arg2[%c0_1, %c0_2] : memref<1x117xf32, #tpu.memory_space<vmem>>, vector<1x117xf32>
    %2 = vector.broadcast %1 : vector<1x117xf32> to vector<8x117xf32>
    %3 = arith.mulf %0, %2 : vector<8x117xf32>
    %cst = arith.constant dense<0.000000e+00> : vector<8xf32>
    %4 = vector.multi_reduction <add>, %3, %cst [1] : vector<8x117xf32> to vector<8xf32>
    %c0_3 = arith.constant 0 : index
    %5 = memref.load %arg3[%c0_3] : memref<1xf32, #tpu.memory_space<smem>>
    %6 = vector.broadcast %5 : f32 to vector<8xf32>
    %7 = arith.addf %4, %6 : vector<8xf32>
    %8 = vector.shape_cast %7 : vector<8xf32> to vector<1x1x8xf32>
    %c0_4 = arith.constant 0 : index
    %c0_5 = arith.constant 0 : index
    %c0_6 = arith.constant 0 : index
    %9 = vector.load %arg4[%c0_4, %c0_5, %c0_6] : memref<1x1x8xf32, #tpu.memory_space<vmem>>, vector<1x1x8xf32>
    tpu.vector_store %arg4[%c0_4, %c0_5, %c0_6], %8 {strides = array<i32>} : memref<1x1x8xf32, #tpu.memory_space<vmem>>, vector<1x1x8xf32>,
    return
  }
  func.func @transform_0(%arg0: i32) -> (i32, i32) {
    %c0_i32 = arith.constant 0 : i32
    %c0_i32_0 = arith.constant 0 : i32
    return %arg0, %c0_i32 : i32, i32
  }
  func.func @transform_1(%arg0: i32) -> (i32, i32) {
    %c0_i32 = arith.constant 0 : i32
    %c0_i32_0 = arith.constant 0 : i32
    %c0_i32_1 = arith.constant 0 : i32
    return %c0_i32, %c0_i32_0 : i32, i32
  }
  func.func @transform_2(%arg0: i32) -> i32 {
    %c0_i32 = arith.constant 0 : i32
    %c0_i32_0 = arith.constant 0 : i32
    return %c0_i32 : i32
  }
  func.func @transform_3(%arg0: i32) -> (i32, i32, i32) {
    %c0_i32 = arith.constant 0 : i32
    %c0_i32_0 = arith.constant 0 : i32
    %c0_i32_1 = arith.constant 0 : i32
    return %arg0, %c0_i32, %c0_i32_0 : i32, i32, i32
  }
}

</mosaic_0001>

<llo_original>
// kernel: tpu_custom_call.1
$region0: #{tpu_custom_call.1}
  #allocation0 [shape = 'u32[]', space=smem, size = 0x4, offset = 0x4, fixed_abs, tag = 'smem constant byte address 0x4 - core index']
  #allocation1 [shape = 'u32[144,128]{1,0:T(1,128)}', space=vmem, size = 0x12000, scoped, tag = 'internal scratch']
  #allocation2 [shape = 'f32[1]{0:T(128)S(6)}', space=smem, size = 0x200, scoped, tag = 'scoped memory for tpu_custom_call.1']
  %s0 = inlined_call_operand.hbm [shape: f32[8,117], index: 0, kind: input, shape index: {}]
  %s1 = inlined_call_operand.vmem [shape: f32[1,117], index: 1, kind: input, shape index: {}]
  %s2 = inlined_call_operand.<no memory space> [shape: f32[1], index: 2, kind: input, shape index: {}]
  %s3 = inlined_call_operand.hbm [shape: f32[1,1,8], index: 3, kind: output, shape index: {}]
  %s4 = sld [smem:[#allocation0]]
  $region26: #{tpu_custom_call.1} parent=0
    _
  %s6 = ssub.s32 1, %s4
  %s7 = scalar_select 0, %s6, %s4
  %8 = sst [smem:[#allocation2]] %s2
  $region1: #{tpu_custom_call.1} parent=0
    #allocation3 [shape = 'u8[4096]{0}', space=vmem, size = 0x1000, scoped, tag = 'input window, operand 0, single buffered']
    #allocation4 [shape = 's32[1]{0}', space=sflag, size = 0x4, scoped, tag = 'scoped memory for tpu_custom_call.1']
    #allocation5 [shape = 's32[1]{0}', space=sflag, size = 0x4, scoped, tag = 'scoped memory for tpu_custom_call.1']
    #allocation6 [shape = 'u8[512]{0}', space=vmem, size = 0x400, scoped, tag = 'output window, operand 0, single buffered']
    %9 = vsyncpa [#allocation4], 0
    %10 = vsyncpa [#allocation5], 0
    // Predicated region
    $region2: #{tpu_custom_call.1} parent=1 // pred_check
      _
    $region3: #{tpu_custom_call.1} parent=1 // pred_check_branch
      %12 = sbr.rel (0) target = $region5
    $region4: #{tpu_custom_call.1} parent=1 // pred_region
      %s14 = ssub.s32 128, 128
      %15 = vsyncadd [#allocation4], %s14
      %s17 = sshll.u32 [#allocation3], 4
      %s18 = int_to_ptr.vmem [resolvable:$true] %s17
      %20 = dma.hbm_to_vmem [thread:$0]  %s0, 128, %s18, [#allocation4]
    $region5: #{tpu_custom_call.1} parent=1 // pred_fallthru
      _
    // Predicated region
    $region6: #{tpu_custom_call.1} parent=1 // pred_check
      _
    $region7: #{tpu_custom_call.1} parent=1 // pred_check_branch
      %22 = sbr.rel (0) target = $region9
    $region8: #{tpu_custom_call.1} parent=1 // pred_region
      _
    $region9: #{tpu_custom_call.1} parent=1 // pred_fallthru
      _
    // Predicated region
    $region10: #{tpu_custom_call.1} parent=1 // pred_check
      _
    $region11: #{tpu_custom_call.1} parent=1 // pred_check_branch
      %24 = sbr.rel (0) target = $region13
    $region12: #{tpu_custom_call.1} parent=1 // pred_region
      _
    $region13: #{tpu_custom_call.1} parent=1 // pred_fallthru
      _
    // Predicated region
    $region14: #{tpu_custom_call.1} parent=1 // pred_check
      _
    $region15: #{tpu_custom_call.1} parent=1 // pred_check_branch
      %26 = sbr.rel (0) target = $region17
    $region16: #{tpu_custom_call.1} parent=1 // pred_region
      %27 = dma.done [#allocation4], 128
    $region17: #{tpu_custom_call.1} parent=1 // pred_fallthru
      _
    %v28 = vld [vmem:[#allocation3] sm:$0xff]
    %v29 = vld [vmem:[%s1] sm:$0x1]
    %v31 = vlaneseq
    %v32 = vshrl.u32 %v31, 7
    %v33 = vsub.s32 0, %v32
    %v34 = vrot.slane %v29, %v33
    %v36 = vmul.f32 %v28, %v34
    %vm37 = vcmask 957440
    %v38 = vsel %vm37, %v36, 0.0
    %39 = vadd.xlane.f32.xlu0 %v38
    %v40 = vpop.xlane.xlu0 %39
    %s41 = sld [smem:[#allocation2]]
    %v42 = vstv %s41
    %v43 = vadd.f32 %v40, %v42
    %v45 = vlaneseq
    %v46 = vand.u32 %v45, 127
    %v47 = vlaneseq
    %v48 = vshrl.u32 %v47, 7
    %v49 = vsub.s32 %v46, %v48
    %v50 = vrot.slane %v43, %v49
    %vm52 = vcmask 57344
    %53 = vst.msk [vmem:[#allocation6] sm:$0x1] %vm52, %v50
    // Predicated region
    $region18: #{tpu_custom_call.1} parent=1 // pred_check
      _
    $region19: #{tpu_custom_call.1} parent=1 // pred_check_branch
      %55 = sbr.rel (0) target = $region21
    $region20: #{tpu_custom_call.1} parent=1 // pred_region
      %s57 = ssub.s32 16, 16
      %58 = vsyncadd [#allocation5], %s57
      %s60 = sshll.u32 [#allocation6], 4
      %s61 = int_to_ptr.vmem [resolvable:$true] %s60
      %63 = dma.vmem_to_hbm [thread:$0]  %s61, 16, %s3, [#allocation5]
    $region21: #{tpu_custom_call.1} parent=1 // pred_fallthru
      _
    // Predicated region
    $region22: #{tpu_custom_call.1} parent=1 // pred_check
      _
    $region23: #{tpu_custom_call.1} parent=1 // pred_check_branch
      %65 = sbr.rel (0) target = $region25
    $region24: #{tpu_custom_call.1} parent=1 // pred_region
      %66 = dma.done [#allocation5], 16
    $region25: #{tpu_custom_call.1} parent=1 // pred_fallthru
      _
    %67 = vsyncpa [#allocation4], 1
    %68 = vsyncpa [#allocation5], 1

</llo_original>
